<compile_context>
chip_gen: v5e
topology: v5e:2x2
jax: 0.10.0
libtpu: 0.0.40
codegen_flags: <defaults>
</compile_context>

<pallas_src>
import jax
import jax.numpy as jnp
from jax.experimental import pallas as pl
from jax.experimental.pallas import tpu as pltpu


def _round_up(x, m):
    return (x + m - 1) // m * m


def _conv_stats_kernel(p_ref, w_ref, conv_ref, sum_ref, sumsq_ref):
    # Pass 1: conv-as-matmul on the MXU + streaming per-channel statistics.
    acc = jnp.dot(p_ref[...], w_ref[...], preferred_element_type=jnp.float32)
    conv_ref[...] = acc

    @pl.when(pl.program_id(0) == 0)
    def _():
        sum_ref[...] = jnp.zeros_like(sum_ref)
        sumsq_ref[...] = jnp.zeros_like(sumsq_ref)

    sum_ref[...] += jnp.sum(acc, axis=0, keepdims=True)
    sumsq_ref[...] += jnp.sum(acc * acc, axis=0, keepdims=True)


def _affine_relu_kernel(conv_ref, scale_ref, bias_ref, o_ref):
    # Pass 2: folded BatchNorm affine + ReLU (2 VPU ops per element).
    y = conv_ref[...] * scale_ref[...] + bias_ref[...]
    o_ref[...] = jnp.maximum(y, 0.0).astype(o_ref.dtype)


def basic_conv2d(x_nchw, weight_oihw, gamma, beta, *, stride=1, padding=1,
                 eps=1e-3, tm=256):
    N, Cin, H, W = x_nchw.shape
    Cout, _, KH, KW = weight_oihw.shape
    Ho = (H + 2 * padding - KH) // stride + 1
    Wo = (W + 2 * padding - KW) // stride + 1

    # --- glue: NCHW -> NHWC, pad, im2col (pure data movement) ---
    x = jnp.transpose(x_nchw, (0, 2, 3, 1))
    x = jnp.pad(x, ((0, 0), (padding, padding), (padding, padding), (0, 0)))
    taps = []
    for kh in range(KH):
        for kw in range(KW):
            taps.append(
                x[:, kh:kh + stride * Ho:stride, kw:kw + stride * Wo:stride, :]
            )  # (N, Ho, Wo, Cin), tap ordering (kh, kw, cin)
    patches = jnp.concatenate(taps, axis=-1).reshape(N * Ho * Wo, KH * KW * Cin)
    # OIHW -> (KH, KW, Cin, Cout) -> (K, Cout), matching the tap ordering above.
    w2d = jnp.transpose(weight_oihw, (2, 3, 1, 0)).reshape(KH * KW * Cin, Cout)

    M, K = patches.shape
    # MXU / lane-friendly padding. Zero-filled rows/cols are exact no-ops for both
    # the matmul and the statistics (stats divide by the true M below).
    Kp = _round_up(K, 128)
    Cp = _round_up(Cout, 128)
    tm = min(tm, _round_up(M, 8))          # tile rows; multiple of 8 for f32 layout
    Mp = _round_up(M, tm)
    grid_m = Mp // tm

    patches_p = jnp.zeros((Mp, Kp), jnp.float32).at[:M, :K].set(
        patches.astype(jnp.float32))
    w_p = jnp.zeros((Kp, Cp), jnp.float32).at[:K, :Cout].set(w2d.astype(jnp.float32))

    # --- pass 1: tiled matmul + streaming sum / sum-of-squares ---
    conv_out, ch_sum, ch_sumsq = pl.pallas_call(
        _conv_stats_kernel,
        out_shape=(
            jax.ShapeDtypeStruct((Mp, Cp), jnp.float32),
            jax.ShapeDtypeStruct((1, Cp), jnp.float32),
            jax.ShapeDtypeStruct((1, Cp), jnp.float32),
        ),
        grid=(grid_m,),
        in_specs=[
            pl.BlockSpec((tm, Kp), lambda i: (i, 0)),
            pl.BlockSpec((Kp, Cp), lambda i: (0, 0)),
        ],
        out_specs=(
            pl.BlockSpec((tm, Cp), lambda i: (i, 0)),
            pl.BlockSpec((1, Cp), lambda i: (0, 0)),   # resident accumulator
            pl.BlockSpec((1, Cp), lambda i: (0, 0)),   # resident accumulator
        ),
        compiler_params=pltpu.CompilerParams(
            dimension_semantics=("arbitrary",),        # stats carried across tiles
            vmem_limit_bytes=32 * 1024 * 1024,
        ),
    )(patches_p, w_p)

    # --- tiny per-channel glue: fold BN into one scale + bias (f32) ---
    inv_m = 1.0 / float(M)                              # true M, not padded Mp
    mean = ch_sum * inv_m
    var = jnp.maximum(ch_sumsq * inv_m - mean * mean, 0.0)   # biased var; guard cancellation
    gamma_p = jnp.zeros((1, Cp), jnp.float32).at[0, :Cout].set(gamma.astype(jnp.float32))
    beta_p = jnp.zeros((1, Cp), jnp.float32).at[0, :Cout].set(beta.astype(jnp.float32))
    scale = gamma_p * jax.lax.rsqrt(var + eps)
    bias = beta_p - mean * scale

    # --- pass 2: affine + ReLU, fully parallel over M tiles ---
    out_p = pl.pallas_call(
        _affine_relu_kernel,
        out_shape=jax.ShapeDtypeStruct((Mp, Cp), x_nchw.dtype),
        grid=(grid_m,),
        in_specs=[
            pl.BlockSpec((tm, Cp), lambda i: (i, 0)),
            pl.BlockSpec((1, Cp), lambda i: (0, 0)),
            pl.BlockSpec((1, Cp), lambda i: (0, 0)),
        ],
        out_specs=pl.BlockSpec((tm, Cp), lambda i: (i, 0)),
        compiler_params=pltpu.CompilerParams(
            dimension_semantics=("parallel",),          # 2 TCs on v7x
            vmem_limit_bytes=32 * 1024 * 1024,
        ),
    )(conv_out, scale, bias)

    out = out_p[:M, :Cout].reshape(N, Ho, Wo, Cout)
    return jnp.transpose(out, (0, 3, 1, 2))  # back to NCHW


def _reference(x, w, gamma, beta, stride, padding, eps):
    y = jax.lax.conv_general_dilated(
        x, w, (stride, stride), [(padding, padding)] * 2,
        dimension_numbers=("NCHW", "OIHW", "NCHW"))
    mean = jnp.mean(y, axis=(0, 2, 3), keepdims=True)
    var = jnp.mean(jnp.square(y - mean), axis=(0, 2, 3), keepdims=True)
    yn = (y - mean) * jax.lax.rsqrt(var + eps) * gamma.reshape(1, -1, 1, 1) \
         + beta.reshape(1, -1, 1, 1)
    return jnp.maximum(yn, 0.0)


if __name__ == "__main__":
    key = jax.random.PRNGKey(0)
    k1, k2, k3, k4 = jax.random.split(key, 4)

    # Small shapes consistent with BasicConv2d(in=4, out=8, kernel_size=3, padding=1)
    N, Cin, H, W = 2, 4, 16, 16
    Cout, KH, KW = 8, 3, 3

    x = jax.random.normal(k1, (N, Cin, H, W), dtype=jnp.float32)
    conv_weight = 0.1 * jax.random.normal(k2, (Cout, Cin, KH, KW), dtype=jnp.float32)
    bn_gamma = 1.0 + 0.1 * jax.random.normal(k3, (Cout,), dtype=jnp.float32)
    bn_beta = 0.1 * jax.random.normal(k4, (Cout,), dtype=jnp.float32)

    out = basic_conv2d(x, conv_weight, bn_gamma, bn_beta,
                       stride=1, padding=1, eps=1e-3)
    out = jax.block_until_ready(out)

    assert out.shape == (N, Cout, H, W), out.shape
    ref = _reference(x, conv_weight, bn_gamma, bn_beta, 1, 1, 1e-3)
    assert jnp.allclose(out, ref, rtol=1e-4, atol=1e-4), \
        float(jnp.max(jnp.abs(out - ref)))

    print("KERNEL_OK")
</pallas_src>

<mosaic_0001>
module attributes {stable_mosaic.version = 11 : i64} {
  func.func @_conv_stats_kernel(%arg0: i32, %arg1: memref<256x128xf32, #tpu.memory_space<vmem>>, %arg2: memref<128x128xf32, #tpu.memory_space<vmem>>, %arg3: memref<256x128xf32, #tpu.memory_space<vmem>>, %arg4: memref<1x128xf32, #tpu.memory_space<vmem>>, %arg5: memref<1x128xf32, #tpu.memory_space<vmem>>) attributes {dimension_semantics = [#tpu.dimension_semantics<arbitrary>], iteration_bounds = array<i64: 2>, scalar_prefetch = 0 : i64, scratch_operands = 0 : i64, tpu.core_type = #tpu.core_type<tc>, window_params = [{transform_indices = @transform_0, window_bounds = array<i64: 256, 128>}, {pipeline_mode = #tpu.pipeline_mode<synchronous>, transform_indices = @transform_1, window_bounds = array<i64: 128, 128>}, {transform_indices = @transform_2, window_bounds = array<i64: 256, 128>}, {pipeline_mode = #tpu.pipeline_mode<synchronous>, transform_indices = @transform_3, window_bounds = array<i64: 1, 128>}, {pipeline_mode = #tpu.pipeline_mode<synchronous>, transform_indices = @transform_4, window_bounds = array<i64: 1, 128>}]} {
    %c0 = arith.constant 0 : index
    %c0_0 = arith.constant 0 : index
    %0 = vector.load %arg1[%c0, %c0_0] : memref<256x128xf32, #tpu.memory_space<vmem>>, vector<256x128xf32>
    %c0_1 = arith.constant 0 : index
    %c0_2 = arith.constant 0 : index
    %1 = vector.load %arg2[%c0_1, %c0_2] : memref<128x128xf32, #tpu.memory_space<vmem>>, vector<128x128xf32>
    %cst = arith.constant dense<0.000000e+00> : vector<256x128xf32>
    %2 = tpu.matmul %0, %1, %cst {dimension_numbers = #tpu.dot_dimension_numbers<[1], [0], [0], [1], [0, 0, 1, 1], [], []>} : vector<256x128xf32>, vector<128x128xf32>, vector<256x128xf32> -> vector<256x128xf32>
    %c0_3 = arith.constant 0 : index
    %c0_4 = arith.constant 0 : index
    %3 = vector.load %arg3[%c0_3, %c0_4] : memref<256x128xf32, #tpu.memory_space<vmem>>, vector<256x128xf32>
    tpu.vector_store %arg3[%c0_3, %c0_4], %2 {strides = array<i32>} : memref<256x128xf32, #tpu.memory_space<vmem>>, vector<256x128xf32>,
    %c0_i32 = arith.constant 0 : i32
    %4 = arith.cmpi eq, %arg0, %c0_i32 : i32
    %5 = arith.extui %4 : i1 to i32
    %c0_i32_5 = arith.constant 0 : i32
    %6 = arith.cmpi ne, %5, %c0_i32_5 : i32
    scf.if %6 {
      %cst_16 = arith.constant 0.000000e+00 : f32
      %18 = vector.broadcast %cst_16 : f32 to vector<1x128xf32>
      %c0_17 = arith.constant 0 : index
      %c0_18 = arith.constant 0 : index
      %19 = vector.load %arg4[%c0_17, %c0_18] : memref<1x128xf32, #tpu.memory_space<vmem>>, vector<1x128xf32>
      tpu.vector_store %arg4[%c0_17, %c0_18], %18 {strides = array<i32>} : memref<1x128xf32, #tpu.memory_space<vmem>>, vector<1x128xf32>,
      %cst_19 = arith.constant 0.000000e+00 : f32
      %20 = vector.broadcast %cst_19 : f32 to vector<1x128xf32>
      %c0_20 = arith.constant 0 : index
      %c0_21 = arith.constant 0 : index
      %21 = vector.load %arg5[%c0_20, %c0_21] : memref<1x128xf32, #tpu.memory_space<vmem>>, vector<1x128xf32>
      tpu.vector_store %arg5[%c0_20, %c0_21], %20 {strides = array<i32>} : memref<1x128xf32, #tpu.memory_space<vmem>>, vector<1x128xf32>,
    } else {
    }
    %c0_6 = arith.constant 0 : index
    %c0_7 = arith.constant 0 : index
    %7 = vector.load %arg4[%c0_6, %c0_7] : memref<1x128xf32, #tpu.memory_space<vmem>>, vector<1x128xf32>
    %cst_8 = arith.constant dense<0.000000e+00> : vector<128xf32>
    %8 = vector.multi_reduction <add>, %2, %cst_8 [0] : vector<256x128xf32> to vector<128xf32>
    %9 = vector.shape_cast %8 : vector<128xf32> to vector<1x128xf32>
    %10 = arith.addf %7, %9 : vector<1x128xf32>
    %c0_9 = arith.constant 0 : index
    %c0_10 = arith.constant 0 : index
    %11 = vector.load %arg4[%c0_9, %c0_10] : memref<1x128xf32, #tpu.memory_space<vmem>>, vector<1x128xf32>
    tpu.vector_store %arg4[%c0_9, %c0_10], %10 {strides = array<i32>} : memref<1x128xf32, #tpu.memory_space<vmem>>, vector<1x128xf32>,
    %c0_11 = arith.constant 0 : index
    %c0_12 = arith.constant 0 : index
    %12 = vector.load %arg5[%c0_11, %c0_12] : memref<1x128xf32, #tpu.memory_space<vmem>>, vector<1x128xf32>
    %13 = arith.mulf %2, %2 : vector<256x128xf32>
    %cst_13 = arith.constant dense<0.000000e+00> : vector<128xf32>
    %14 = vector.multi_reduction <add>, %13, %cst_13 [0] : vector<256x128xf32> to vector<128xf32>
    %15 = vector.shape_cast %14 : vector<128xf32> to vector<1x128xf32>
    %16 = arith.addf %12, %15 : vector<1x128xf32>
    %c0_14 = arith.constant 0 : index
    %c0_15 = arith.constant 0 : index
    %17 = vector.load %arg5[%c0_14, %c0_15] : memref<1x128xf32, #tpu.memory_space<vmem>>, vector<1x128xf32>
    tpu.vector_store %arg5[%c0_14, %c0_15], %16 {strides = array<i32>} : memref<1x128xf32, #tpu.memory_space<vmem>>, vector<1x128xf32>,
    return
  }
  func.func @transform_0(%arg0: i32) -> (i32, i32) {
    %c0_i32 = arith.constant 0 : i32
    %c0_i32_0 = arith.constant 0 : i32
    return %arg0, %c0_i32 : i32, i32
  }
  func.func @transform_1(%arg0: i32) -> (i32, i32) {
    %c0_i32 = arith.constant 0 : i32
    %c0_i32_0 = arith.constant 0 : i32
    %c0_i32_1 = arith.constant 0 : i32
    return %c0_i32, %c0_i32_0 : i32, i32
  }
  func.func @transform_2(%arg0: i32) -> (i32, i32) {
    %c0_i32 = arith.constant 0 : i32
    %c0_i32_0 = arith.constant 0 : i32
    return %arg0, %c0_i32 : i32, i32
  }
  func.func @transform_3(%arg0: i32) -> (i32, i32) {
    %c0_i32 = arith.constant 0 : i32
    %c0_i32_0 = arith.constant 0 : i32
    %c0_i32_1 = arith.constant 0 : i32
    return %c0_i32, %c0_i32_0 : i32, i32
  }
  func.func @transform_4(%arg0: i32) -> (i32, i32) {
    %c0_i32 = arith.constant 0 : i32
    %c0_i32_0 = arith.constant 0 : i32
    %c0_i32_1 = arith.constant 0 : i32
    return %c0_i32, %c0_i32_0 : i32, i32
  }
}

</mosaic_0001>

<llo_original>
// kernel: tpu_custom_call.1
$region0: #{tpu_custom_call.1}
  #allocation0 [shape = 'u32[]', space=smem, size = 0x4, offset = 0x4, fixed_abs, tag = 'smem constant byte address 0x4 - core index']
  #allocation1 [shape = 'u32[72,128]{1,0:T(1,128)}', space=vmem, size = 0x9000, scoped, tag = 'internal scratch']
  %s0 = inlined_call_operand.hbm [shape: f32[512,128], index: 0, kind: input, shape index: {}]
  %s1 = inlined_call_operand.hbm [shape: f32[128,128], index: 1, kind: input, shape index: {}]
  %s2 = inlined_call_operand.hbm [shape: f32[512,128], index: 2, kind: output, shape index: {0}]
  %s3 = inlined_call_operand.hbm [shape: f32[1,128], index: 3, kind: output, shape index: {1}]
  %s4 = inlined_call_operand.hbm [shape: f32[1,128], index: 4, kind: output, shape index: {2}]
  %5 = xla_tuple %s2, %s3, %s4
  %s6 = sld [smem:[#allocation0]]
  $region69: #{tpu_custom_call.1} parent=0
    _
  %s8 = ssub.s32 1, %s6
  %s9 = scalar_select 0, %s8, %s6
  $region1: #{tpu_custom_call.1} parent=0
    #allocation2 [shape = 'u8[262144]{0}', space=vmem, size = 0x40000, scoped, tag = 'input window, operand 0']
    #allocation3 [shape = 's32[2]{0}', space=sflag, size = 0x8, scoped, tag = 'scoped memory for tpu_custom_call.1']
    #allocation4 [shape = 's32[2]{0}', space=sflag, size = 0x8, scoped, tag = 'scoped memory for tpu_custom_call.1']
    #allocation5 [shape = 'u8[65536]{0}', space=vmem, size = 0x10000, scoped, tag = 'input window, operand 1, single buffered']
    #allocation6 [shape = 's32[1]{0}', space=sflag, size = 0x4, scoped, tag = 'scoped memory for tpu_custom_call.1']
    #allocation7 [shape = 'u8[262144]{0}', space=vmem, size = 0x40000, scoped, tag = 'output window, operand 0']
    #allocation8 [shape = 'u8[512]{0}', space=vmem, size = 0x400, scoped, tag = 'output window, operand 1, single buffered']
    #allocation9 [shape = 's32[1]{0}', space=sflag, size = 0x4, scoped, tag = 'scoped memory for tpu_custom_call.1']
    #allocation10 [shape = 'u8[512]{0}', space=vmem, size = 0x400, scoped, tag = 'output window, operand 2, single buffered']
    %10 = vsyncpa [#allocation3], 0
    %s11 = scalar_lea.sflag [#allocation3], 1
    %12 = vsyncpa %s11, 0
    %13 = vsyncpa [#allocation6], 0
    %14 = vsyncpa [#allocation4], 0
    %s15 = scalar_lea.sflag [#allocation4], 1
    %16 = vsyncpa %s15, 0
    %17 = vsyncpa [#allocation9], 0
    loop: start=0, step=1, limit=4
    $region2: #{tpu_custom_call.1} parent=1 // loop_pre_header
      _
    $region3: #{tpu_custom_call.1} parent=1 // loop_header
      %s19 = sphi 0, %s23
      %p20 = scmp.ge.s32.totalorder %s19, 4
      %s29 = sphi 0, %s31
      %s32 = sphi 0, %s29
      %s33 = sphi 0, %s32
      %s49 = sphi 0, %s33
      %s53 = sphi 0, %s53
      %s55 = sphi 0, %s53
      %s56 = sphi 0, %s55
      %s70 = sphi 0, %s56
      %s76 = sphi 0, %s78
      %s79 = sphi 0, %s76
      %s80 = sphi 0, %s79
      %s96 = sphi 0, %s80
      %s100 = sphi 0, %s100
      %s102 = sphi 0, %s100
      %s103 = sphi 0, %s102
      %s117 = sphi 0, %s103
      %s121 = sphi 0, %s121
      %s123 = sphi 0, %s121
      %s124 = sphi 0, %s123
      %s138 = sphi 0, %s124
    $region4: #{tpu_custom_call.1} parent=1 // loop_header_branch
      %22 = sbr.rel (%p20) target = $region8
    $region5: #{tpu_custom_call.1} parent=1 // loop_body
      %s24 = ssub.s32 %s19, 1
      %s25 = ssub.s32 %s19, 2
      %s26 = sadd.s32 %s19, 1
      %s27 = ssub.s32 %s19, %s26
      %p28 = scmp.eq.s32.totalorder %s27, 0
      %s30 = sadd.s32 %s29, 1
      %s31 = scalar_select %p28, %s29, %s30
      %p34 = pneg %p28
      %p35 = scmp.eq.s32.totalorder %s19, 1
      %p36 = por %p34, %p35
      %p37 = scmp.ne.s32.totalorder %s29, %s32
      %p38 = scmp.eq.s32.totalorder %s19, 0
      %p39 = por %p37, %p38
      %p40 = scmp.ne.s32.totalorder %s29, %s32
      %p41 = scmp.eq.s32.totalorder %s24, 1
      %p42 = por %p40, %p41
      %p43 = scmp.ne.s32.totalorder %s32, %s33
      %p44 = scmp.eq.s32.totalorder %s24, 0
      %p45 = por %p43, %p44
      %p46 = scmp.ne.s32.totalorder %s32, %s33
      %p47 = scmp.eq.s32.totalorder %s25, 1
      %p48 = por %p46, %p47
      %p50 = scmp.ne.s32.totalorder %s33, %s49
      %p51 = scmp.eq.s32.totalorder %s25, 0
      %p52 = por %p50, %p51
      %s54 = sadd.s32 %s53, 1
      %p57 = scmp.eq.s32.totalorder %s19, 1
      %p58 = scmp.ne.s32.totalorder %s53, %s55
      %p59 = scmp.eq.s32.totalorder %s19, 0
      %p60 = por %p58, %p59
      %p61 = scmp.ne.s32.totalorder %s53, %s55
      %p62 = scmp.eq.s32.totalorder %s24, 1
      %p63 = por %p61, %p62
      %p64 = scmp.ne.s32.totalorder %s55, %s56
      %p65 = scmp.eq.s32.totalorder %s24, 0
      %p66 = por %p64, %p65
      %p67 = scmp.ne.s32.totalorder %s55, %s56
      %p68 = scmp.eq.s32.totalorder %s25, 1
      %p69 = por %p67, %p68
      %p71 = scmp.ne.s32.totalorder %s56, %s70
      %p72 = scmp.eq.s32.totalorder %s25, 0
      %p73 = por %p71, %p72
      %s74 = ssub.s32 %s19, %s26
      %p75 = scmp.eq.s32.totalorder %s74, 0
      %s77 = sadd.s32 %s76, 1
      %s78 = scalar_select %p75, %s76, %s77
      %p81 = pneg %p75
      %p82 = scmp.eq.s32.totalorder %s19, 1
      %p83 = por %p81, %p82
      %p84 = scmp.ne.s32.totalorder %s76, %s79
      %p85 = scmp.eq.s32.totalorder %s19, 0
      %p86 = por %p84, %p85
      %p87 = scmp.ne.s32.totalorder %s76, %s79
      %p88 = scmp.eq.s32.totalorder %s24, 1
      %p89 = por %p87, %p88
      %p90 = scmp.ne.s32.totalorder %s79, %s80
      %p91 = scmp.eq.s32.totalorder %s24, 0
      %p92 = por %p90, %p91
      %p93 = scmp.ne.s32.totalorder %s79, %s80
      %p94 = scmp.eq.s32.totalorder %s25, 1
      %p95 = por %p93, %p94
      %p97 = scmp.ne.s32.totalorder %s80, %s96
      %p98 = scmp.eq.s32.totalorder %s25, 0
      %p99 = por %p97, %p98
      %s101 = sadd.s32 %s100, 1
      %p104 = scmp.eq.s32.totalorder %s19, 1
      %p105 = scmp.ne.s32.totalorder %s100, %s102
      %p106 = scmp.eq.s32.totalorder %s19, 0
      %p107 = por %p105, %p106
      %p108 = scmp.ne.s32.totalorder %s100, %s102
      %p109 = scmp.eq.s32.totalorder %s24, 1
      %p110 = por %p108, %p109
      %p111 = scmp.ne.s32.totalorder %s102, %s103
      %p112 = scmp.eq.s32.totalorder %s24, 0
      %p113 = por %p111, %p112
      %p114 = scmp.ne.s32.totalorder %s102, %s103
      %p115 = scmp.eq.s32.totalorder %s25, 1
      %p116 = por %p114, %p115
      %p118 = scmp.ne.s32.totalorder %s103, %s117
      %p119 = scmp.eq.s32.totalorder %s25, 0
      %p120 = por %p118, %p119
      %s122 = sadd.s32 %s121, 1
      %p125 = scmp.eq.s32.totalorder %s19, 1
      %p126 = scmp.ne.s32.totalorder %s121, %s123
      %p127 = scmp.eq.s32.totalorder %s19, 0
      %p128 = por %p126, %p127
      %p129 = scmp.ne.s32.totalorder %s121, %s123
      %p130 = scmp.eq.s32.totalorder %s24, 1
      %p131 = por %p129, %p130
      %p132 = scmp.ne.s32.totalorder %s123, %s124
      %p133 = scmp.eq.s32.totalorder %s24, 0
      %p134 = por %p132, %p133
      %p135 = scmp.ne.s32.totalorder %s123, %s124
      %p136 = scmp.eq.s32.totalorder %s25, 1
      %p137 = por %p135, %p136
      %p139 = scmp.ne.s32.totalorder %s124, %s138
      %p140 = scmp.eq.s32.totalorder %s25, 0
      %p141 = por %p139, %p140
      %p142 = scmp.le.s32.totalorder 1, %s19
      %p143 = scmp.lt.s32.totalorder %s19, 3
      %p144 = pnand %p142, %p143
      %p145 = pneg %p144
      // Predicated region
      $region9: #{tpu_custom_call.1} parent=5 // pred_check
        _
      $region10: #{tpu_custom_call.1} parent=5 // pred_check_branch
        %147 = sbr.rel (%p144) target = $region12
      $region11: #{tpu_custom_call.1} parent=5 // pred_region
        %s148 = ssub.s32 %s19, 1
        // Predicated region
        $region13: #{tpu_custom_call.1} parent=11 // pred_check
          %p149 = pneg %p66
        $region14: #{tpu_custom_call.1} parent=11 // pred_check_branch
          %151 = sbr.rel (%p149) target = $region16
        $region15: #{tpu_custom_call.1} parent=11 // pred_region
          %153 = vsyncadd [#allocation6], 0
          %s154 = sshll.u32 %s1, 4
          %s155 = int_to_ptr.hbm [resolvable:$true] %s154
          %s156 = sshll.u32 [#allocation5], 4
          %s157 = int_to_ptr.vmem [resolvable:$true] %s156
          %162 = dma.hbm_to_vmem [thread:$0]  %s155, 2048, %s157, [#allocation6], 128, 128, 8
        $region16: #{tpu_custom_call.1} parent=11 // pred_fallthru
          _
      $region12: #{tpu_custom_call.1} parent=5 // pred_fallthru
        _
      %p163 = scmp.lt.s32.totalorder %s19, 2
      // Predicated region
      $region17: #{tpu_custom_call.1} parent=5 // pred_check
        %p164 = pneg %p163
      $region18: #{tpu_custom_call.1} parent=5 // pred_check_branch
        %166 = sbr.rel (%p164) target = $region20
      $region19: #{tpu_custom_call.1} parent=5 // pred_region
        // Predicated region
        $region21: #{tpu_custom_call.1} parent=19 // pred_check
          %p167 = pneg %p39
        $region22: #{tpu_custom_call.1} parent=19 // pred_check_branch
          %169 = sbr.rel (%p167) target = $region24
        $region23: #{tpu_custom_call.1} parent=19 // pred_region
          %s170 = sand.u32 %s29, 1
          %s171 = scalar_lea.sflag [#allocation3], %s170
          %s172 = sand.u32 %s29, 1
          %s173 = smul.addr %s172, 256
          %s174 = scalar_lea.vmem [#allocation2], %s173
          %s175 = smul.u32 32, %s19
          %177 = vsyncadd %s171, 0
          %s178 = smul.addr %s175, 8
          %s179 = scalar_lea.hbm %s0, %s178
          %s180 = sshll.u32 %s179, 4
          %s181 = int_to_ptr.hbm [resolvable:$true] %s180
          %s182 = sshll.u32 %s174, 4
          %s183 = int_to_ptr.vmem [resolvable:$true] %s182
          %188 = dma.hbm_to_vmem [thread:$0]  %s181, 4096, %s183, %s171, 128, 128, 8
        $region24: #{tpu_custom_call.1} parent=19 // pred_fallthru
          _
      $region20: #{tpu_custom_call.1} parent=5 // pred_fallthru
        _
      %p189 = scmp.le.s32.totalorder 1, %s19
      %p190 = scmp.lt.s32.totalorder %s19, 3
      %p191 = pnand %p189, %p190
      %p192 = pneg %p191
      // Predicated region
      $region25: #{tpu_custom_call.1} parent=5 // pred_check
        _
      $region26: #{tpu_custom_call.1} parent=5 // pred_check_branch
        %194 = sbr.rel (%p191) target = $region28
      $region27: #{tpu_custom_call.1} parent=5 // pred_region
        %s195 = ssub.s32 %s19, 1
        %s196 = sand.u32 %s32, 1
        %s197 = scalar_lea.sflag [#allocation3], %s196
        %s198 = sand.u32 %s32, 1
        %s199 = smul.addr %s198, 256
        %s200 = scalar_lea.vmem [#allocation2], %s199
        // Predicated region
        $region29: #{tpu_custom_call.1} parent=27 // pred_check
          %p201 = pneg %p45
        $region30: #{tpu_custom_call.1} parent=27 // pred_check_branch
          %203 = sbr.rel (%p201) target = $region32
        $region31: #{tpu_custom_call.1} parent=27 // pred_region
          %205 = dma.done %s197, 4096
        $region32: #{tpu_custom_call.1} parent=27 // pred_fallthru
          _
        // Predicated region
        $region33: #{tpu_custom_call.1} parent=27 // pred_check
          %p206 = pneg %p66
        $region34: #{tpu_custom_call.1} parent=27 // pred_check_branch
          %208 = sbr.rel (%p206) target = $region36
        $region35: #{tpu_custom_call.1} parent=27 // pred_region
          %210 = dma.done [#allocation6], 2048
        $region36: #{tpu_custom_call.1} parent=27 // pred_fallthru
          _
        %s211 = sand.u32 %s32, 1
        %s212 = scalar_lea.sflag [#allocation3], %s211
        %s213 = sand.u32 %s32, 1
        %s214 = smul.addr %s213, 256
        %s215 = scalar_lea.vmem [#allocation2], %s214
        %p216 = pneg %p45
        %p217 = pneg %p42
        %p218 = pneg %p66
        %p219 = pneg %p63
        %p220 = pneg %p92
        %p221 = pneg %p89
        %s222 = sand.u32 %s79, 1
        %s223 = scalar_lea.sflag [#allocation4], %s222
        %s224 = sand.u32 %s79, 1
        %s225 = smul.addr %s224, 256
        %s226 = scalar_lea.vmem [#allocation7], %s225
        %p227 = pneg %p113
        %p228 = pneg %p110
        %p229 = pneg %p134
        %p230 = pneg %p131
        %s231 = smul.u32 32, %s24
        %s232 = smul.u32 32, %s24
        %v233 = vld [vmem:[%s200] sm:$0xff]
        %v234 = vld [vmem:[%s200 + $0x8] sm:$0xff]
        %v235 = vld [vmem:[%s200 + $0x10] sm:$0xff]
        %v236 = vld [vmem:[%s200 + $0x18] sm:$0xff]
        %v237 = vld [vmem:[%s200 + $0x20] sm:$0xff]
        %v238 = vld [vmem:[%s200 + $0x28] sm:$0xff]
        %v239 = vld [vmem:[%s200 + $0x30] sm:$0xff]
        %v240 = vld [vmem:[%s200 + $0x38] sm:$0xff]
        %v241 = vld [vmem:[%s200 + $0x40] sm:$0xff]
        %v242 = vld [vmem:[%s200 + $0x48] sm:$0xff]
        %v243 = vld [vmem:[%s200 + $0x50] sm:$0xff]
        %v244 = vld [vmem:[%s200 + $0x58] sm:$0xff]
        %v245 = vld [vmem:[%s200 + $0x60] sm:$0xff]
        %v246 = vld [vmem:[%s200 + $0x68] sm:$0xff]
        %v247 = vld [vmem:[%s200 + $0x70] sm:$0xff]
        %v248 = vld [vmem:[%s200 + $0x78] sm:$0xff]
        %v249 = vld [vmem:[%s200 + $0x80] sm:$0xff]
        %v250 = vld [vmem:[%s200 + $0x88] sm:$0xff]
        %v251 = vld [vmem:[%s200 + $0x90] sm:$0xff]
        %v252 = vld [vmem:[%s200 + $0x98] sm:$0xff]
        %v253 = vld [vmem:[%s200 + $0xa0] sm:$0xff]
        %v254 = vld [vmem:[%s200 + $0xa8] sm:$0xff]
        %v255 = vld [vmem:[%s200 + $0xb0] sm:$0xff]
        %v256 = vld [vmem:[%s200 + $0xb8] sm:$0xff]
        %v257 = vld [vmem:[%s200 + $0xc0] sm:$0xff]
        %v258 = vld [vmem:[%s200 + $0xc8] sm:$0xff]
        %v259 = vld [vmem:[%s200 + $0xd0] sm:$0xff]
        %v260 = vld [vmem:[%s200 + $0xd8] sm:$0xff]
        %v261 = vld [vmem:[%s200 + $0xe0] sm:$0xff]
        %v262 = vld [vmem:[%s200 + $0xe8] sm:$0xff]
        %v263 = vld [vmem:[%s200 + $0xf0] sm:$0xff]
        %v264 = vld [vmem:[%s200 + $0xf8] sm:$0xff]
        %v265 = vld [vmem:[#allocation5] sm:$0xff]
        %v266 = vld [vmem:[#allocation5 + $0x8] sm:$0xff]
        %v267 = vld [vmem:[#allocation5 + $0x10] sm:$0xff]
        %v268 = vld [vmem:[#allocation5 + $0x18] sm:$0xff]
        %v269 = vld [vmem:[#allocation5 + $0x20] sm:$0xff]
        %v270 = vld [vmem:[#allocation5 + $0x28] sm:$0xff]
        %v271 = vld [vmem:[#allocation5 + $0x30] sm:$0xff]
        %v272 = vld [vmem:[#allocation5 + $0x38] sm:$0xff]
        %v273 = vld [vmem:[#allocation5 + $0x40] sm:$0xff]
        %v274 = vld [vmem:[#allocation5 + $0x48] sm:$0xff]
        %v275 = vld [vmem:[#allocation5 + $0x50] sm:$0xff]
        %v276 = vld [vmem:[#allocation5 + $0x58] sm:$0xff]
        %v277 = vld [vmem:[#allocation5 + $0x60] sm:$0xff]
        %v278 = vld [vmem:[#allocation5 + $0x68] sm:$0xff]
        %v279 = vld [vmem:[#allocation5 + $0x70] sm:$0xff]
        %v280 = vld [vmem:[#allocation5 + $0x78] sm:$0xff]
        %281 = vmatpush.msra.mxu0 %v280
        %282 = vmatpush.msra.mxu0 %v279
        %283 = vmatpush.msra.mxu0 %v278
        %284 = vmatpush.msra.mxu0 %v277
        %285 = vmatpush.msra.mxu0 %v276
        %286 = vmatpush.msra.mxu0 %v275
        %287 = vmatpush.msra.mxu0 %v274
        %288 = vmatpush.msra.mxu0 %v273
        %289 = vmatpush.msra.mxu0 %v272
        %290 = vmatpush.msra.mxu0 %v271
        %291 = vmatpush.msra.mxu0 %v270
        %292 = vmatpush.msra.mxu0 %v269
        %293 = vmatpush.msra.mxu0 %v268
        %294 = vmatpush.msra.mxu0 %v267
        %295 = vmatpush.msra.mxu0 %v266
        %296 = vmatpush.msra.mxu0 %v265
        %297 = vmatmul.f32.gmra.mxu0 %v233
        %v298 = vpop.f32.mrf.mxu0
        %v299 = vadd.f32 0.0, %v298
        %300 = vmatmul.f32.gmra.mxu0 %v234
        %v301 = vpop.f32.mrf.mxu0
        %v302 = vadd.f32 0.0, %v301
        %303 = vmatmul.f32.gmra.mxu0 %v235
        %v304 = vpop.f32.mrf.mxu0
        %v305 = vadd.f32 0.0, %v304
        %306 = vmatmul.f32.gmra.mxu0 %v236
        %v307 = vpop.f32.mrf.mxu0
        %v308 = vadd.f32 0.0, %v307
        %309 = vmatmul.f32.gmra.mxu0 %v237
        %v310 = vpop.f32.mrf.mxu0
        %v311 = vadd.f32 0.0, %v310
        %312 = vmatmul.f32.gmra.mxu0 %v238
        %v313 = vpop.f32.mrf.mxu0
        %v314 = vadd.f32 0.0, %v313
        %315 = vmatmul.f32.gmra.mxu0 %v239
        %v316 = vpop.f32.mrf.mxu0
        %v317 = vadd.f32 0.0, %v316
        %318 = vmatmul.f32.gmra.mxu0 %v240
        %v319 = vpop.f32.mrf.mxu0
        %v320 = vadd.f32 0.0, %v319
        %321 = vmatmul.f32.gmra.mxu0 %v241
        %v322 = vpop.f32.mrf.mxu0
        %v323 = vadd.f32 0.0, %v322
        %324 = vmatmul.f32.gmra.mxu0 %v242
        %v325 = vpop.f32.mrf.mxu0
        %v326 = vadd.f32 0.0, %v325
        %327 = vmatmul.f32.gmra.mxu0 %v243
        %v328 = vpop.f32.mrf.mxu0
        %v329 = vadd.f32 0.0, %v328
        %330 = vmatmul.f32.gmra.mxu0 %v244
        %v331 = vpop.f32.mrf.mxu0
        %v332 = vadd.f32 0.0, %v331
        %333 = vmatmul.f32.gmra.mxu0 %v245
        %v334 = vpop.f32.mrf.mxu0
        %v335 = vadd.f32 0.0, %v334
        %336 = vmatmul.f32.gmra.mxu0 %v246
        %v337 = vpop.f32.mrf.mxu0
        %v338 = vadd.f32 0.0, %v337
        %339 = vmatmul.f32.gmra.mxu0 %v247
        %v340 = vpop.f32.mrf.mxu0
        %v341 = vadd.f32 0.0, %v340
        %342 = vmatmul.f32.gmra.mxu0 %v248
        %v343 = vpop.f32.mrf.mxu0
        %v344 = vadd.f32 0.0, %v343
        %345 = vmatmul.f32.gmra.mxu0 %v249
        %v346 = vpop.f32.mrf.mxu0
        %v347 = vadd.f32 0.0, %v346
        %348 = vmatmul.f32.gmra.mxu0 %v250
        %v349 = vpop.f32.mrf.mxu0
        %v350 = vadd.f32 0.0, %v349
        %351 = vmatmul.f32.gmra.mxu0 %v251
        %v352 = vpop.f32.mrf.mxu0
        %v353 = vadd.f32 0.0, %v352
        %354 = vmatmul.f32.gmra.mxu0 %v252
        %v355 = vpop.f32.mrf.mxu0
        %v356 = vadd.f32 0.0, %v355
        %357 = vmatmul.f32.gmra.mxu0 %v253
        %v358 = vpop.f32.mrf.mxu0
        %v359 = vadd.f32 0.0, %v358
        %360 = vmatmul.f32.gmra.mxu0 %v254
        %v361 = vpop.f32.mrf.mxu0
        %v362 = vadd.f32 0.0, %v361
        %363 = vmatmul.f32.gmra.mxu0 %v255
        %v364 = vpop.f32.mrf.mxu0
        %v365 = vadd.f32 0.0, %v364
        %366 = vmatmul.f32.gmra.mxu0 %v256
        %v367 = vpop.f32.mrf.mxu0
        %v368 = vadd.f32 0.0, %v367
        %369 = vmatmul.f32.gmra.mxu0 %v257
        %v370 = vpop.f32.mrf.mxu0
        %v371 = vadd.f32 0.0, %v370
        %372 = vmatmul.f32.gmra.mxu0 %v258
        %v373 = vpop.f32.mrf.mxu0
        %v374 = vadd.f32 0.0, %v373
        %375 = vmatmul.f32.gmra.mxu0 %v259
        %v376 = vpop.f32.mrf.mxu0
        %v377 = vadd.f32 0.0, %v376
        %378 = vmatmul.f32.gmra.mxu0 %v260
        %v379 = vpop.f32.mrf.mxu0
        %v380 = vadd.f32 0.0, %v379
        %381 = vmatmul.f32.gmra.mxu0 %v261
        %v382 = vpop.f32.mrf.mxu0
        %v383 = vadd.f32 0.0, %v382
        %384 = vmatmul.f32.gmra.mxu0 %v262
        %v385 = vpop.f32.mrf.mxu0
        %v386 = vadd.f32 0.0, %v385
        %387 = vmatmul.f32.gmra.mxu0 %v263
        %v388 = vpop.f32.mrf.mxu0
        %v389 = vadd.f32 0.0, %v388
        %390 = vmatmul.f32.gmra.mxu0 %v264
        %v391 = vpop.f32.mrf.mxu0
        %v392 = vadd.f32 0.0, %v391
        %393 = vdwg.mxu0
        %394 = vst [vmem:[%s226] sm:$0xff] %v299
        %395 = vst [vmem:[%s226 + $0x8] sm:$0xff] %v302
        %396 = vst [vmem:[%s226 + $0x10] sm:$0xff] %v305
        %397 = vst [vmem:[%s226 + $0x18] sm:$0xff] %v308
        %398 = vst [vmem:[%s226 + $0x20] sm:$0xff] %v311
        %399 = vst [vmem:[%s226 + $0x28] sm:$0xff] %v314
        %400 = vst [vmem:[%s226 + $0x30] sm:$0xff] %v317
        %401 = vst [vmem:[%s226 + $0x38] sm:$0xff] %v320
        %402 = vst [vmem:[%s226 + $0x40] sm:$0xff] %v323
        %403 = vst [vmem:[%s226 + $0x48] sm:$0xff] %v326
        %404 = vst [vmem:[%s226 + $0x50] sm:$0xff] %v329
        %405 = vst [vmem:[%s226 + $0x58] sm:$0xff] %v332
        %406 = vst [vmem:[%s226 + $0x60] sm:$0xff] %v335
        %407 = vst [vmem:[%s226 + $0x68] sm:$0xff] %v338
        %408 = vst [vmem:[%s226 + $0x70] sm:$0xff] %v341
        %409 = vst [vmem:[%s226 + $0x78] sm:$0xff] %v344
        %410 = vst [vmem:[%s226 + $0x80] sm:$0xff] %v347
        %411 = vst [vmem:[%s226 + $0x88] sm:$0xff] %v350
        %412 = vst [vmem:[%s226 + $0x90] sm:$0xff] %v353
        %413 = vst [vmem:[%s226 + $0x98] sm:$0xff] %v356
        %414 = vst [vmem:[%s226 + $0xa0] sm:$0xff] %v359
        %415 = vst [vmem:[%s226 + $0xa8] sm:$0xff] %v362
        %416 = vst [vmem:[%s226 + $0xb0] sm:$0xff] %v365
        %417 = vst [vmem:[%s226 + $0xb8] sm:$0xff] %v368
        %418 = vst [vmem:[%s226 + $0xc0] sm:$0xff] %v371
        %419 = vst [vmem:[%s226 + $0xc8] sm:$0xff] %v374
        %420 = vst [vmem:[%s226 + $0xd0] sm:$0xff] %v377
        %421 = vst [vmem:[%s226 + $0xd8] sm:$0xff] %v380
        %422 = vst [vmem:[%s226 + $0xe0] sm:$0xff] %v383
        %423 = vst [vmem:[%s226 + $0xe8] sm:$0xff] %v386
        %424 = vst [vmem:[%s226 + $0xf0] sm:$0xff] %v389
        %425 = vst [vmem:[%s226 + $0xf8] sm:$0xff] %v392
        %p426 = scmp.eq.s32.totalorder %s24, 0
        // Predicated region
        $region37: #{tpu_custom_call.1} parent=27 // pred_check
          %p427 = pneg %p426
        $region38: #{tpu_custom_call.1} parent=27 // pred_check_branch
          %429 = sbr.rel (%p427) target = $region40
        $region39: #{tpu_custom_call.1} parent=27 // pred_region
          %430 = vst [vmem:[#allocation8] sm:$0x1] 0.0
          %431 = vst [vmem:[#allocation10] sm:$0x1] 0.0
        $region40: #{tpu_custom_call.1} parent=27 // pred_fallthru
          _
        %v432 = vld [vmem:[#allocation8] sm:$0x1]
        %v433 = vadd.f32 %v299, %v302
        %v434 = vadd.f32 %v433, %v305
        %v435 = vadd.f32 %v434, %v308
        %v436 = vadd.f32 %v435, %v311
        %v437 = vadd.f32 %v436, %v314
        %v438 = vadd.f32 %v437, %v317
        %v439 = vadd.f32 %v438, %v320
        %v440 = vadd.f32 %v439, %v323
        %v441 = vadd.f32 %v440, %v326
        %v442 = vadd.f32 %v441, %v329
        %v443 = vadd.f32 %v442, %v332
        %v444 = vadd.f32 %v443, %v335
        %v445 = vadd.f32 %v444, %v338
        %v446 = vadd.f32 %v445, %v341
        %v447 = vadd.f32 %v446, %v344
        %v448 = vadd.f32 %v447, %v347
        %v449 = vadd.f32 %v448, %v350
        %v450 = vadd.f32 %v449, %v353
        %v451 = vadd.f32 %v450, %v356
        %v452 = vadd.f32 %v451, %v359
        %v453 = vadd.f32 %v452, %v362
        %v454 = vadd.f32 %v453, %v365
        %v455 = vadd.f32 %v454, %v368
        %v456 = vadd.f32 %v455, %v371
        %v457 = vadd.f32 %v456, %v374
        %v458 = vadd.f32 %v457, %v377
        %v459 = vadd.f32 %v458, %v380
        %v460 = vadd.f32 %v459, %v383
        %v461 = vadd.f32 %v460, %v386
        %v462 = vadd.f32 %v461, %v389
        %v463 = vadd.f32 %v462, %v392
        %v464 = vrot.slane %v463, 4
        %v465 = vadd.f32 %v463, %v464
        %v466 = vrot.slane %v465, 2
        %v467 = vadd.f32 %v465, %v466
        %v468 = vrot.slane %v467, 1
        %v469 = vadd.f32 %v467, %v468
        %v470 = vadd.f32 %v432, %v469
        %471 = vst [vmem:[#allocation8] sm:$0x1] %v470
        %v472 = vld [vmem:[#allocation10] sm:$0x1]
        %v473 = vmul.f32 %v299, %v299
        %v474 = vmul.f32 %v302, %v302
        %v475 = vmul.f32 %v305, %v305
        %v476 = vmul.f32 %v308, %v308
        %v477 = vmul.f32 %v311, %v311
        %v478 = vmul.f32 %v314, %v314
        %v479 = vmul.f32 %v317, %v317
        %v480 = vmul.f32 %v320, %v320
        %v481 = vmul.f32 %v323, %v323
        %v482 = vmul.f32 %v326, %v326
        %v483 = vmul.f32 %v329, %v329
        %v484 = vmul.f32 %v332, %v332
        %v485 = vmul.f32 %v335, %v335
        %v486 = vmul.f32 %v338, %v338
        %v487 = vmul.f32 %v341, %v341
        %v488 = vmul.f32 %v344, %v344
        %v489 = vmul.f32 %v347, %v347
        %v490 = vmul.f32 %v350, %v350
        %v491 = vmul.f32 %v353, %v353
        %v492 = vmul.f32 %v356, %v356
        %v493 = vmul.f32 %v359, %v359
        %v494 = vmul.f32 %v362, %v362
        %v495 = vmul.f32 %v365, %v365
        %v496 = vmul.f32 %v368, %v368
        %v497 = vmul.f32 %v371, %v371
        %v498 = vmul.f32 %v374, %v374
        %v499 = vmul.f32 %v377, %v377
        %v500 = vmul.f32 %v380, %v380
        %v501 = vmul.f32 %v383, %v383
        %v502 = vmul.f32 %v386, %v386
        %v503 = vmul.f32 %v389, %v389
        %v504 = vmul.f32 %v392, %v392
        %v505 = vadd.f32 %v473, %v474
        %v506 = vadd.f32 %v505, %v475
        %v507 = vadd.f32 %v506, %v476
        %v508 = vadd.f32 %v507, %v477
        %v509 = vadd.f32 %v508, %v478
        %v510 = vadd.f32 %v509, %v479
        %v511 = vadd.f32 %v510, %v480
        %v512 = vadd.f32 %v511, %v481
        %v513 = vadd.f32 %v512, %v482
        %v514 = vadd.f32 %v513, %v483
        %v515 = vadd.f32 %v514, %v484
        %v516 = vadd.f32 %v515, %v485
        %v517 = vadd.f32 %v516, %v486
        %v518 = vadd.f32 %v517, %v487
        %v519 = vadd.f32 %v518, %v488
        %v520 = vadd.f32 %v519, %v489
        %v521 = vadd.f32 %v520, %v490
        %v522 = vadd.f32 %v521, %v491
        %v523 = vadd.f32 %v522, %v492
        %v524 = vadd.f32 %v523, %v493
        %v525 = vadd.f32 %v524, %v494
        %v526 = vadd.f32 %v525, %v495
        %v527 = vadd.f32 %v526, %v496
        %v528 = vadd.f32 %v527, %v497
        %v529 = vadd.f32 %v528, %v498
        %v530 = vadd.f32 %v529, %v499
        %v531 = vadd.f32 %v530, %v500
        %v532 = vadd.f32 %v531, %v501
        %v533 = vadd.f32 %v532, %v502
        %v534 = vadd.f32 %v533, %v503
        %v535 = vadd.f32 %v534, %v504
        %v536 = vrot.slane %v535, 4
        %v537 = vadd.f32 %v535, %v536
        %v538 = vrot.slane %v537, 2
        %v539 = vadd.f32 %v537, %v538
        %v540 = vrot.slane %v539, 1
        %v541 = vadd.f32 %v539, %v540
        %v542 = vadd.f32 %v472, %v541
        %543 = vst [vmem:[#allocation10] sm:$0x1] %v542
        %s544 = sand.u32 %s79, 1
        %s545 = scalar_lea.sflag [#allocation4], %s544
        %s546 = sand.u32 %s79, 1
        %s547 = smul.addr %s546, 256
        %s548 = scalar_lea.vmem [#allocation7], %s547
        // Predicated region
        $region41: #{tpu_custom_call.1} parent=27 // pred_check
          %p549 = pneg %p89
        $region42: #{tpu_custom_call.1} parent=27 // pred_check_branch
          %551 = sbr.rel (%p549) target = $region44
        $region43: #{tpu_custom_call.1} parent=27 // pred_region
          %s552 = smul.u32 32, %s24
          %554 = vsyncadd %s545, 0
          %s555 = smul.addr %s552, 8
          %s556 = scalar_lea.hbm %s2, %s555
          %s557 = sshll.u32 %s548, 4
          %s558 = int_to_ptr.vmem [resolvable:$true] %s557
          %s559 = sshll.u32 %s556, 4
          %s560 = int_to_ptr.hbm [resolvable:$true] %s559
          %565 = dma.vmem_to_hbm [thread:$0]  %s558, 4096, %s560, %s545, 128, 128, 8
        $region44: #{tpu_custom_call.1} parent=27 // pred_fallthru
          _
        // Predicated region
        $region45: #{tpu_custom_call.1} parent=27 // pred_check
          %p566 = pneg %p110
        $region46: #{tpu_custom_call.1} parent=27 // pred_check_branch
          %568 = sbr.rel (%p566) target = $region48
        $region47: #{tpu_custom_call.1} parent=27 // pred_region
          %570 = vsyncadd [#allocation9], 0
          %s572 = sshll.u32 [#allocation8], 4
          %s573 = int_to_ptr.vmem [resolvable:$true] %s572
          %s574 = sshll.u32 %s3, 4
          %s575 = int_to_ptr.hbm [resolvable:$true] %s574
          %577 = dma.vmem_to_hbm [thread:$0]  %s573, 16, %s575, [#allocation9]
        $region48: #{tpu_custom_call.1} parent=27 // pred_fallthru
          _
        // Predicated region
        $region49: #{tpu_custom_call.1} parent=27 // pred_check
          %p578 = pneg %p131
        $region50: #{tpu_custom_call.1} parent=27 // pred_check_branch
          %580 = sbr.rel (%p578) target = $region52
        $region51: #{tpu_custom_call.1} parent=27 // pred_region
          %582 = vsyncadd [#allocation9], 0
          %s584 = sshll.u32 [#allocation10], 4
          %s585 = int_to_ptr.vmem [resolvable:$true] %s584
          %s586 = sshll.u32 %s4, 4
          %s587 = int_to_ptr.hbm [resolvable:$true] %s586
          %589 = dma.vmem_to_hbm [thread:$0]  %s585, 16, %s587, [#allocation9]
        $region52: #{tpu_custom_call.1} parent=27 // pred_fallthru
          _
        // Predicated region
        $region53: #{tpu_custom_call.1} parent=27 // pred_check
          %p590 = pneg %p110
        $region54: #{tpu_custom_call.1} parent=27 // pred_check_branch
          %592 = sbr.rel (%p590) target = $region56
        $region55: #{tpu_custom_call.1} parent=27 // pred_region
          %594 = dma.done [#allocation9], 16
        $region56: #{tpu_custom_call.1} parent=27 // pred_fallthru
          _
        // Predicated region
        $region57: #{tpu_custom_call.1} parent=27 // pred_check
          %p595 = pneg %p131
        $region58: #{tpu_custom_call.1} parent=27 // pred_check_branch
          %597 = sbr.rel (%p595) target = $region60
        $region59: #{tpu_custom_call.1} parent=27 // pred_region
          %599 = dma.done [#allocation9], 16
        $region60: #{tpu_custom_call.1} parent=27 // pred_fallthru
          _
      $region28: #{tpu_custom_call.1} parent=5 // pred_fallthru
        _
      %p600 = scmp.le.s32.totalorder 2, %s19
      // Predicated region
      $region61: #{tpu_custom_call.1} parent=5 // pred_check
        %p601 = pneg %p600
      $region62: #{tpu_custom_call.1} parent=5 // pred_check_branch
        %603 = sbr.rel (%p601) target = $region64
      $region63: #{tpu_custom_call.1} parent=5 // pred_region
        %s604 = ssub.s32 %s19, 2
        // Predicated region
        $region65: #{tpu_custom_call.1} parent=63 // pred_check
          %p605 = pneg %p95
        $region66: #{tpu_custom_call.1} parent=63 // pred_check_branch
          %607 = sbr.rel (%p605) target = $region68
        $region67: #{tpu_custom_call.1} parent=63 // pred_region
          %s608 = sand.u32 %s80, 1
          %s609 = scalar_lea.sflag [#allocation4], %s608
          %s610 = sand.u32 %s80, 1
          %s611 = smul.addr %s610, 256
          %s612 = scalar_lea.vmem [#allocation7], %s611
          %614 = dma.done %s609, 4096
        $region68: #{tpu_custom_call.1} parent=63 // pred_fallthru
          _
      $region64: #{tpu_custom_call.1} parent=5 // pred_fallthru
        _
    $region6: #{tpu_custom_call.1} parent=1 // loop_footer
      %s23 = sadd.s32 1, %s19
    $region7: #{tpu_custom_call.1} parent=1 // loop_footer_branch
      %18 = sbr.rel target = $region3
    $region8: #{tpu_custom_call.1} parent=1 // loop_exit
      _
    %615 = vsyncpa [#allocation3], 1
    %s616 = scalar_lea.sflag [#allocation3], 1
    %617 = vsyncpa %s616, 1
    %618 = vsyncpa [#allocation6], 1
    %619 = vsyncpa [#allocation4], 1
    %s620 = scalar_lea.sflag [#allocation4], 1
    %621 = vsyncpa %s620, 1
    %622 = vsyncpa [#allocation9], 1

</llo_original>
